<compile_context>
chip_gen: v5e
topology: v5e:2x2
jax: 0.10.0
libtpu: 0.0.40
codegen_flags: <defaults>
</compile_context>

<pallas_src>
import jax
import jax.numpy as jnp
from jax.experimental import pallas as pl
from jax.experimental.pallas import tpu as pltpu

_LANES = 128
_NEG_BIG = -1e30  # effectively -inf bias for the lane-padded softmax columns


def _round_up(n, m):
    return ((n + m - 1) // m) * m


def tabular_nn_kernel(x_ref, w_ref, b_ref, o_ref):
    # x_ref: (tb, in_dim)       activation tile, native dtype (MXU casts)
    # w_ref: (in_dim, out_pad)  pre-transposed, lane-padded weight (f32)
    # b_ref: (1, out_pad)       bias; padded lanes hold -1e30 so exp() == 0
    # o_ref: (tb, out_dim)      probabilities -- only real columns hit HBM
    logits = jnp.dot(x_ref[...], w_ref[...],
                     preferred_element_type=jnp.float32) + b_ref[...]

    # Numerically-stable softmax in f32.  Padded lanes (-1e30 bias) give
    # exp() == 0 exactly, so the 128-wide max/sum equal the real reductions.
    m = jnp.max(logits, axis=-1, keepdims=True)
    e = jnp.exp(logits - m)
    denom = jnp.sum(e, axis=-1, keepdims=True)
    probs = e / denom  # exact divide: kernel is memory-bound, VALU is free

    out_dim = o_ref.shape[-1]          # static
    o_ref[...] = probs[:, :out_dim].astype(o_ref.dtype)


def prepare_tabular_nn_params(weight, bias):
    """Per-weight layout prep, hoisted out of the per-call path (run once).

    weight: (out_dim, in_dim) PyTorch nn.Linear layout; bias: (out_dim,).
    Returns (w_t, b_row): weight transposed to (in_dim, out_pad) so the MXU
    is fed directly (no in-kernel transpose), output dim padded to a lane
    multiple with zero weights and -1e30 bias so padded logits vanish.
    """
    out_dim, in_dim = weight.shape
    out_pad = _round_up(out_dim, _LANES)
    w_t = jnp.zeros((in_dim, out_pad), jnp.float32)
    w_t = w_t.at[:, :out_dim].set(weight.astype(jnp.float32).T)
    b_row = jnp.full((1, out_pad), _NEG_BIG, jnp.float32)
    b_row = b_row.at[:, :out_dim].set(bias.astype(jnp.float32))
    return w_t, b_row


def tabular_nn_forward(x, w_t, b_row, out_dim, *, block_b=512):
    """softmax(x @ W.T + b, -1) with (w_t, b_row) from prepare_tabular_nn_params."""
    B, in_dim = x.shape
    assert w_t.shape[0] == in_dim
    out_pad = w_t.shape[1]
    assert 0 < out_dim <= out_pad

    # ---- batch-tile selection ----------------------------------------------
    #  * >=2 grid steps when the batch allows it (v7x 2-TC sharding + overlap)
    #  * tile = round_up(cdiv(B, n_tiles), 8): ragged-block waste < 8 rows;
    #    Pallas masks the ragged last block, so no wrapper-side jnp.pad of x.
    n_tiles = max(pl.cdiv(B, block_b), 2 if B > 8 else 1)
    tb = min(_round_up(pl.cdiv(B, n_tiles), 8), _round_up(B, 8))

    x_bytes = jnp.dtype(x.dtype).itemsize
    out_bytes = x_bytes  # output stored in x's dtype

    def _step_bytes(t):
        return (2 * t * in_dim * x_bytes        # x tile, double-buffered
                + 2 * t * out_dim * out_bytes   # out tile, double-buffered
                + in_dim * out_pad * 4          # weight, single-buffered
                + out_pad * 4)                  # bias

    # Keep the per-step working set under v7x's 32 MiB scoped VMEM (v5e/v6e
    # have more headroom; the same tile is fine there).
    vmem_budget = 24 * 1024 * 1024
    while tb > 8 and _step_bytes(tb) > vmem_budget:
        tb = _round_up(tb // 2, 8)
    vmem_limit = int(min(32 * 1024 * 1024,
                         max(4 * 1024 * 1024, 2 * _step_bytes(tb))))

    grid = (pl.cdiv(B, tb),)

    cost = pl.CostEstimate(
        flops=2 * B * in_dim * out_pad,
        transcendentals=B * out_pad,
        bytes_accessed=(B * in_dim * x_bytes + in_dim * out_pad * 4
                        + out_pad * 4 + B * out_dim * out_bytes),
    )

    # Weight / bias index_maps are constant across the grid: single-buffer
    # them (a second pipeline copy would never be used).
    resident = pl.Buffered(buffer_count=1)

    return pl.pallas_call(
        tabular_nn_kernel,
        # Narrow, native-dtype output: only the real out_dim columns are
        # written back to HBM.
        # TODO(synk): on v5e (single vst slot) re-benchmark vs. a lane-padded
        # full-width store; masked narrow stores cost relatively more there.
        out_shape=jax.ShapeDtypeStruct((B, out_dim), x.dtype),
        grid=grid,
        in_specs=[
            pl.BlockSpec((tb, in_dim), lambda i: (i, 0)),            # x tile
            pl.BlockSpec((in_dim, out_pad), lambda i: (0, 0),
                         pipeline_mode=resident),                     # weight
            pl.BlockSpec((1, out_pad), lambda i: (0, 0),
                         pipeline_mode=resident),                     # bias
        ],
        out_specs=pl.BlockSpec((tb, out_dim), lambda i: (i, 0)),
        compiler_params=pltpu.CompilerParams(
            dimension_semantics=("parallel",),
            vmem_limit_bytes=vmem_limit,
        ),
        cost_estimate=cost,
    )(x, w_t, b_row)


def reference_forward(x, weight, bias):
    return jax.nn.softmax(x @ weight.T + bias, axis=-1)


if __name__ == "__main__":
    key = jax.random.PRNGKey(0)
    k_x, k_w, k_b = jax.random.split(key, 3)

    # Synthetic env: Box observation space of dim 16, Discrete action space
    # with 4 actions.  hidden_size is a constructor arg but unused by forward
    # (the network is a single Linear -> Softmax).
    batch = 8
    input_size = 16
    output_size = 4

    # Mimic nn.Linear default init: U(-1/sqrt(fan_in), +1/sqrt(fan_in)).
    bound = 1.0 / (input_size ** 0.5)
    weight = jax.random.uniform(k_w, (output_size, input_size), jnp.float32,
                                minval=-bound, maxval=bound)
    bias = jax.random.uniform(k_b, (output_size,), jnp.float32,
                              minval=-bound, maxval=bound)
    x = jax.random.normal(k_x, (batch, input_size), jnp.float32)

    # Weight-layout prep hoisted: pay the transpose/pad once per weight.
    w_t, b_row = prepare_tabular_nn_params(weight, bias)

    out = tabular_nn_forward(x, w_t, b_row, out_dim=output_size)
    out = jax.block_until_ready(out)
    ref = reference_forward(x, weight, bias)

    assert out.shape == (batch, output_size)
    assert out.dtype == x.dtype
    # Exact in-kernel divide -> rows sum to 1 at f32 accuracy.
    assert jnp.allclose(jnp.sum(out, axis=-1), 1.0, atol=1e-4), "rows must sum to 1"
    # Kernel and reference matmuls both run at default TPU f32 precision, so
    # compare at a tolerance covering bf16-pass rounding.
    assert jnp.allclose(out, ref, atol=2e-3, rtol=2e-3), "mismatch vs reference"

    print("KERNEL_OK")
</pallas_src>

<mosaic_0001>
module attributes {stable_mosaic.version = 11 : i64} {
  func.func @tabular_nn_kernel(%arg0: i32, %arg1: memref<8x16xf32, #tpu.memory_space<vmem>>, %arg2: memref<16x128xf32, #tpu.memory_space<vmem>>, %arg3: memref<1x128xf32, #tpu.memory_space<vmem>>, %arg4: memref<8x4xf32, #tpu.memory_space<vmem>>) attributes {dimension_semantics = [#tpu.dimension_semantics<parallel>], iteration_bounds = array<i64: 1>, scalar_prefetch = 0 : i64, scratch_operands = 0 : i64, tpu.core_type = #tpu.core_type<tc>, window_params = [{transform_indices = @transform_0, window_bounds = array<i64: 8, 16>}, {pipeline_mode = #tpu.pipeline_mode<synchronous>, transform_indices = @transform_1, window_bounds = array<i64: 16, 128>}, {pipeline_mode = #tpu.pipeline_mode<synchronous>, transform_indices = @transform_2, window_bounds = array<i64: 1, 128>}, {transform_indices = @transform_3, window_bounds = array<i64: 8, 4>}]} {
    %c0 = arith.constant 0 : index
    %c0_0 = arith.constant 0 : index
    %0 = vector.load %arg1[%c0, %c0_0] : memref<8x16xf32, #tpu.memory_space<vmem>>, vector<8x16xf32>
    %c0_1 = arith.constant 0 : index
    %c0_2 = arith.constant 0 : index
    %1 = vector.load %arg2[%c0_1, %c0_2] : memref<16x128xf32, #tpu.memory_space<vmem>>, vector<16x128xf32>
    %cst = arith.constant dense<0.000000e+00> : vector<8x128xf32>
    %2 = tpu.matmul %0, %1, %cst {dimension_numbers = #tpu.dot_dimension_numbers<[1], [0], [0], [1], [0, 0, 1, 1], [], []>} : vector<8x16xf32>, vector<16x128xf32>, vector<8x128xf32> -> vector<8x128xf32>
    %c0_3 = arith.constant 0 : index
    %c0_4 = arith.constant 0 : index
    %3 = vector.load %arg3[%c0_3, %c0_4] : memref<1x128xf32, #tpu.memory_space<vmem>>, vector<1x128xf32>
    %4 = vector.broadcast %3 : vector<1x128xf32> to vector<8x128xf32>
    %5 = arith.addf %2, %4 : vector<8x128xf32>
    %cst_5 = arith.constant dense<0xFF800000> : vector<8xf32>
    %6 = vector.multi_reduction <maximumf>, %5, %cst_5 [1] : vector<8x128xf32> to vector<8xf32>
    %7 = vector.shape_cast %6 : vector<8xf32> to vector<8x1xf32>
    %8 = vector.broadcast %7 : vector<8x1xf32> to vector<8x128xf32>
    %9 = arith.subf %5, %8 : vector<8x128xf32>
    %10 = math.exp %9 : vector<8x128xf32>
    %cst_6 = arith.constant dense<0.000000e+00> : vector<8xf32>
    %11 = vector.multi_reduction <add>, %10, %cst_6 [1] : vector<8x128xf32> to vector<8xf32>
    %12 = vector.shape_cast %11 : vector<8xf32> to vector<8x1xf32>
    %13 = vector.broadcast %12 : vector<8x1xf32> to vector<8x128xf32>
    %14 = arith.divf %10, %13 : vector<8x128xf32>
    %15 = vector.extract_strided_slice %14 {offsets = [0, 0], sizes = [8, 4], strides = [1, 1]} : vector<8x128xf32> to vector<8x4xf32>
    %c0_7 = arith.constant 0 : index
    %c0_8 = arith.constant 0 : index
    %16 = vector.load %arg4[%c0_7, %c0_8] : memref<8x4xf32, #tpu.memory_space<vmem>>, vector<8x4xf32>
    tpu.vector_store %arg4[%c0_7, %c0_8], %15 {strides = array<i32>} : memref<8x4xf32, #tpu.memory_space<vmem>>, vector<8x4xf32>,
    return
  }
  func.func @transform_0(%arg0: i32) -> (i32, i32) {
    %c0_i32 = arith.constant 0 : i32
    %c0_i32_0 = arith.constant 0 : i32
    return %arg0, %c0_i32 : i32, i32
  }
  func.func @transform_1(%arg0: i32) -> (i32, i32) {
    %c0_i32 = arith.constant 0 : i32
    %c0_i32_0 = arith.constant 0 : i32
    %c0_i32_1 = arith.constant 0 : i32
    return %c0_i32, %c0_i32_0 : i32, i32
  }
  func.func @transform_2(%arg0: i32) -> (i32, i32) {
    %c0_i32 = arith.constant 0 : i32
    %c0_i32_0 = arith.constant 0 : i32
    %c0_i32_1 = arith.constant 0 : i32
    return %c0_i32, %c0_i32_0 : i32, i32
  }
  func.func @transform_3(%arg0: i32) -> (i32, i32) {
    %c0_i32 = arith.constant 0 : i32
    %c0_i32_0 = arith.constant 0 : i32
    return %arg0, %c0_i32 : i32, i32
  }
}

</mosaic_0001>

<llo_original>
// kernel: tpu_custom_call.1
$region0: #{tpu_custom_call.1}
  #allocation0 [shape = 'u32[]', space=smem, size = 0x4, offset = 0x4, fixed_abs, tag = 'smem constant byte address 0x4 - core index']
  #allocation1 [shape = 'u32[72,128]{1,0:T(1,128)}', space=vmem, size = 0x9000, scoped, tag = 'internal scratch']
  %s0 = inlined_call_operand.hbm [shape: f32[8,16], index: 0, kind: input, shape index: {}]
  %s1 = inlined_call_operand.hbm [shape: f32[16,128], index: 1, kind: input, shape index: {}]
  %s2 = inlined_call_operand.vmem [shape: f32[1,128], index: 2, kind: input, shape index: {}]
  %s3 = inlined_call_operand.vmem [shape: f32[8,4], index: 3, kind: output, shape index: {}]
  %s4 = sld [smem:[#allocation0]]
  $region30: #{tpu_custom_call.1} parent=0
    _
  %s6 = ssub.s32 1, %s4
  %s7 = scalar_select 0, %s6, %s4
  $region1: #{tpu_custom_call.1} parent=0
    #allocation2 [shape = 'u8[4096]{0}', space=vmem, size = 0x1000, scoped, tag = 'input window, operand 0, single buffered']
    #allocation3 [shape = 's32[1]{0}', space=sflag, size = 0x4, scoped, tag = 'scoped memory for tpu_custom_call.1']
    #allocation4 [shape = 'u8[8192]{0}', space=vmem, size = 0x2000, scoped, tag = 'input window, operand 1, single buffered']
    #allocation5 [shape = 's32[1]{0}', space=sflag, size = 0x4, scoped, tag = 'scoped memory for tpu_custom_call.1']
    %8 = vsyncpa [#allocation3], 0
    %9 = vsyncpa [#allocation5], 0
    // Predicated region
    $region2: #{tpu_custom_call.1} parent=1 // pred_check
      _
    $region3: #{tpu_custom_call.1} parent=1 // pred_check_branch
      %11 = sbr.rel (0) target = $region5
    $region4: #{tpu_custom_call.1} parent=1 // pred_region
      %13 = vsyncadd [#allocation3], 0
      %s15 = sshll.u32 %s0, 4
      %s16 = int_to_ptr.hbm [resolvable:$true] %s15
      %s17 = sshll.u32 [#allocation2], 4
      %s18 = int_to_ptr.vmem [resolvable:$true] %s17
      %20 = dma.hbm_to_vmem [thread:$0]  %s16, 128, %s18, [#allocation3]
    $region5: #{tpu_custom_call.1} parent=1 // pred_fallthru
      _
    // Predicated region
    $region6: #{tpu_custom_call.1} parent=1 // pred_check
      _
    $region7: #{tpu_custom_call.1} parent=1 // pred_check_branch
      %22 = sbr.rel (0) target = $region9
    $region8: #{tpu_custom_call.1} parent=1 // pred_region
      %24 = vsyncadd [#allocation5], 0
      %s25 = sshll.u32 %s1, 4
      %s26 = int_to_ptr.hbm [resolvable:$true] %s25
      %s27 = sshll.u32 [#allocation4], 4
      %s28 = int_to_ptr.vmem [resolvable:$true] %s27
      %33 = dma.hbm_to_vmem [thread:$0]  %s26, 256, %s28, [#allocation5], 128, 128, 8
    $region9: #{tpu_custom_call.1} parent=1 // pred_fallthru
      _
    // Predicated region
    $region10: #{tpu_custom_call.1} parent=1 // pred_check
      _
    $region11: #{tpu_custom_call.1} parent=1 // pred_check_branch
      %35 = sbr.rel (0) target = $region13
    $region12: #{tpu_custom_call.1} parent=1 // pred_region
      _
    $region13: #{tpu_custom_call.1} parent=1 // pred_fallthru
      _
    // Predicated region
    $region14: #{tpu_custom_call.1} parent=1 // pred_check
      _
    $region15: #{tpu_custom_call.1} parent=1 // pred_check_branch
      %37 = sbr.rel (0) target = $region17
    $region16: #{tpu_custom_call.1} parent=1 // pred_region
      %39 = dma.done [#allocation3], 128
    $region17: #{tpu_custom_call.1} parent=1 // pred_fallthru
      _
    // Predicated region
    $region18: #{tpu_custom_call.1} parent=1 // pred_check
      _
    $region19: #{tpu_custom_call.1} parent=1 // pred_check_branch
      %41 = sbr.rel (0) target = $region21
    $region20: #{tpu_custom_call.1} parent=1 // pred_region
      %43 = dma.done [#allocation5], 256
    $region21: #{tpu_custom_call.1} parent=1 // pred_fallthru
      _
    %v44 = vld [vmem:[#allocation2] sm:$0xff]
    %v45 = vld [vmem:[#allocation4] sm:$0xff]
    %v46 = vld [vmem:[#allocation4 + $0x8] sm:$0xff]
    %v47 = vld [vmem:[%s2] sm:$0x1]
    %v49 = vperm.slane %v47, 0
    %vm51 = vcmask 130048
    %v53 = vsel %vm51, %v44, 0
    %55 = vmatpush.msra.mxu0 0.0
    %56 = vmatpush.msra.mxu0 0.0
    %57 = vmatpush.msra.mxu0 0.0
    %58 = vmatpush.msra.mxu0 0.0
    %59 = vmatpush.msra.mxu0 0.0
    %60 = vmatpush.msra.mxu0 0.0
    %61 = vmatpush.msra.mxu0 0.0
    %62 = vmatpush.msra.mxu0 0.0
    %63 = vmatpush.msra.mxu0 0.0
    %64 = vmatpush.msra.mxu0 0.0
    %65 = vmatpush.msra.mxu0 0.0
    %66 = vmatpush.msra.mxu0 0.0
    %67 = vmatpush.msra.mxu0 0.0
    %68 = vmatpush.msra.mxu0 0.0
    %69 = vmatpush.msra.mxu0 %v46
    %70 = vmatpush.msra.mxu0 %v45
    %71 = vmatmul.f32.gmra.mxu0 %v53
    %v72 = vpop.f32.mrf.mxu0
    %v73 = vadd.f32 %v49, %v72
    %74 = vdwg.mxu0
    %75 = vmax.xlane.f32.xlu0 %v73
    %v76 = vpop.xlane.xlu0 %75
    %v77 = vsub.f32 %v73, %v76
    %v78 = vmul.f32 %v77, 1.442695
    %v79 = vpow.pop %v78
    %80 = vadd.xlane.f32.xlu0 %v79
    %v81 = vpop.xlane.xlu0 %80
    %v82 = vrcp.pop %v81
    %v83 = vmul.f32 %v81, %v82
    %v84 = vsub.f32 1.0, %v83
    %v85 = vmul.f32 %v82, %v84
    %v86 = vadd.f32 %v82, %v85
    %vm87 = vweird.f32 %v81
    %vm88 = vweird.f32 %v82
    %vm89 = vmor %vm87, %vm88
    %v90 = vsel %vm89, %v82, %v86
    %v91 = vand.u32 2147483647, %v81
    %vm92 = vcmp.eq.f32.partialorder %v91, 8.507059e+37
    %v93 = vand.u32 %v81, 2147483648
    %v94 = vor.u32 1.1754944e-38, %v93
    %v95 = vsel %vm92, %v94, %v90
    %v96 = vmul.f32 %v79, %v95
    %vm97 = vcmask 31744
    %98 = vst.msk [vmem:[%s3] sm:$0xff] %vm97, %v96
    // Predicated region
    $region22: #{tpu_custom_call.1} parent=1 // pred_check
      _
    $region23: #{tpu_custom_call.1} parent=1 // pred_check_branch
      %100 = sbr.rel (0) target = $region25
    $region24: #{tpu_custom_call.1} parent=1 // pred_region
      _
    $region25: #{tpu_custom_call.1} parent=1 // pred_fallthru
      _
    // Predicated region
    $region26: #{tpu_custom_call.1} parent=1 // pred_check
      _
    $region27: #{tpu_custom_call.1} parent=1 // pred_check_branch
      %102 = sbr.rel (0) target = $region29
    $region28: #{tpu_custom_call.1} parent=1 // pred_region
      _
    $region29: #{tpu_custom_call.1} parent=1 // pred_fallthru
      _
    %103 = vsyncpa [#allocation3], 1
    %104 = vsyncpa [#allocation5], 1

</llo_original>
